<compile_context>
chip_gen: v7x
topology: tpu7x:2x2x1
jax: 0.10.0
libtpu: 0.0.40
codegen_flags: <defaults>
</compile_context>

<pallas_src>
import jax
import jax.numpy as jnp
from jax.experimental import pallas as pl
from jax.experimental.pallas import tpu as pltpu


def _round_up(n: int, m: int) -> int:
    return ((n + m - 1) // m) * m


def _policy_mean_kernel(x_ref, w1_ref, w2_ref, wm_ref, b_ref, mean_ref):
    """One batch tile: mean = tanh(tanh(x@W1+b1)@W2+b2)@Wm+bm."""
    mxu_dtype = w1_ref.dtype                      # f32 or bf16
    hidden = w1_ref.shape[1]
    n_out = wm_ref.shape[1]

    x = x_ref[...].astype(mxu_dtype)

    b = b_ref[...]                                # (3, cols) f32, stacked biases
    b1 = b[0:1, :hidden]                          # (1, hidden)
    b2 = b[1:2, :hidden]                          # (1, hidden)
    bm = b[2:3, :n_out]                           # (1, num_outputs)

    h1 = jnp.tanh(
        jnp.dot(x, w1_ref[...], preferred_element_type=jnp.float32) + b1)
    h2 = jnp.tanh(
        jnp.dot(h1.astype(mxu_dtype), w2_ref[...],
                preferred_element_type=jnp.float32) + b2)
    mean = jnp.dot(h2.astype(mxu_dtype), wm_ref[...],
                   preferred_element_type=jnp.float32) + bm
    mean_ref[...] = mean.astype(mean_ref.dtype)


def policy_forward(x, params, *, tile_b: int = 8192):
    """x: (B, num_inputs) float32.  Returns (mean, log_std, std)."""
    B, num_inputs = x.shape
    hidden = params["w1"].shape[1]
    num_outputs = params["wm"].shape[1]
    bias_cols = params["biases"].shape[1]

    # Batch tile choice:
    #  * tiny batch -> one block equal to the full batch dim (legal block),
    #  * otherwise a multiple-of-8 tile, capped so the grid has >= 2 steps
    #    (keeps both v7x TensorCores busy via the "parallel" axis).
    if B <= 8:
        tile_b = B
    else:
        half = _round_up(pl.cdiv(B, 2), 8)
        tile_b = max(8, min(_round_up(tile_b, 8), half))
    grid = (pl.cdiv(B, tile_b),)

    mean = pl.pallas_call(
        _policy_mean_kernel,
        out_shape=jax.ShapeDtypeStruct((B, num_outputs), jnp.float32),
        grid=grid,
        in_specs=[
            # activations: tiled along batch (tail block handled by pipeline)
            pl.BlockSpec((tile_b, num_inputs), lambda i: (i, 0)),
            # weights / biases: constant block index -> resident across steps
            pl.BlockSpec((num_inputs, hidden), lambda i: (0, 0)),
            pl.BlockSpec((hidden, hidden), lambda i: (0, 0)),
            pl.BlockSpec((hidden, num_outputs), lambda i: (0, 0)),
            pl.BlockSpec((3, bias_cols), lambda i: (0, 0)),
        ],
        out_specs=pl.BlockSpec((tile_b, num_outputs), lambda i: (i, 0)),
        compiler_params=pltpu.CompilerParams(
            dimension_semantics=("parallel",)),   # v7x: shard tiles over 2 TCs
    )(x, params["w1"], params["w2"], params["wm"], params["biases"])

    # log_std / std are x-independent parameters: compute outside the kernel,
    # exp is taken over num_outputs values only, then broadcast.
    log_std = jnp.broadcast_to(params["log_std"], mean.shape)
    std = jnp.broadcast_to(jnp.exp(params["log_std"]), mean.shape)
    return mean, log_std, std


def init_policy_params(key, num_inputs, num_outputs, hidden_size,
                       mxu_dtype=jnp.float32):
    """Mimics nn.Linear defaults (uniform +/- 1/sqrt(fan_in)).
    Weights stored pre-transposed (in_features, out_features); biases stacked
    into one (3, cols) f32 operand.  Set mxu_dtype=jnp.bfloat16 on v6e/v7x for
    single-pass MXU matmuls (bias adds / tanh / accumulation stay f32)."""
    ks = jax.random.split(key, 6)

    def linear(kw, kb, fan_in, fan_out):
        bound = 1.0 / jnp.sqrt(jnp.float32(fan_in))
        w = jax.random.uniform(kw, (fan_in, fan_out), jnp.float32, -bound, bound)
        b = jax.random.uniform(kb, (fan_out,), jnp.float32, -bound, bound)
        return w, b

    w1, b1 = linear(ks[0], ks[1], num_inputs, hidden_size)
    w2, b2 = linear(ks[2], ks[3], hidden_size, hidden_size)
    wm, bm = linear(ks[4], ks[5], hidden_size, num_outputs)
    wm = wm * 0.1          # self.action_mean.weight.data.mul_(0.1)
    bm = bm * 0.0          # self.action_mean.bias.data.mul_(0.0)

    bias_cols = max(hidden_size, num_outputs)
    biases = jnp.zeros((3, bias_cols), jnp.float32)
    biases = biases.at[0, :hidden_size].set(b1)
    biases = biases.at[1, :hidden_size].set(b2)
    biases = biases.at[2, :num_outputs].set(bm)

    return {
        "w1": w1.astype(mxu_dtype),
        "w2": w2.astype(mxu_dtype),
        "wm": wm.astype(mxu_dtype),
        "biases": biases,                              # f32 elementwise path
        "log_std": jnp.zeros((1, num_outputs), jnp.float32),
    }


if __name__ == "__main__":
    num_inputs, num_outputs, hidden_size, batch = 16, 8, 32, 4

    key = jax.random.PRNGKey(0)
    k_x, k_p = jax.random.split(key)
    params = init_policy_params(k_p, num_inputs, num_outputs, hidden_size)

    def reference(xr):
        b1 = params["biases"][0, :hidden_size]
        b2 = params["biases"][1, :hidden_size]
        bm = params["biases"][2, :num_outputs]
        h1 = jnp.tanh(xr @ params["w1"] + b1)
        h2 = jnp.tanh(h1 @ params["w2"] + b2)
        return h2 @ params["wm"] + bm

    # Small case (single tiny block, block equals full batch dim).
    x = jax.random.normal(k_x, (batch, num_inputs), jnp.float32)
    mean, log_std, std = jax.block_until_ready(policy_forward(x, params))
    assert mean.shape == (batch, num_outputs)
    assert jnp.allclose(mean, reference(x), atol=1e-5)
    assert jnp.allclose(log_std, jnp.zeros_like(mean))
    assert jnp.allclose(std, jnp.ones_like(mean))

    # Batched case (grid of 4 tiles, weights resident across steps).
    xb = jax.random.normal(k_x, (2048, num_inputs), jnp.float32)
    mean_b, _, _ = jax.block_until_ready(policy_forward(xb, params, tile_b=512))
    assert mean_b.shape == (2048, num_outputs)
    assert jnp.allclose(mean_b, reference(xb), atol=1e-4)

    # Ragged batch (cdiv grid, partial tail block, no padding pass).
    xr = jax.random.normal(k_x, (1000, num_inputs), jnp.float32)
    mean_r, _, _ = jax.block_until_ready(policy_forward(xr, params))
    assert mean_r.shape == (1000, num_outputs)
    assert jnp.allclose(mean_r, reference(xr), atol=1e-4)

    print("KERNEL_OK")
</pallas_src>

<mosaic_0001>
module attributes {stable_mosaic.version = 11 : i64} {
  func.func @_policy_mean_kernel(%arg0: i32, %arg1: memref<4x16xf32, #tpu.memory_space<vmem>>, %arg2: memref<16x32xf32, #tpu.memory_space<vmem>>, %arg3: memref<32x32xf32, #tpu.memory_space<vmem>>, %arg4: memref<32x8xf32, #tpu.memory_space<vmem>>, %arg5: memref<3x32xf32, #tpu.memory_space<vmem>>, %arg6: memref<4x8xf32, #tpu.memory_space<vmem>>) attributes {dimension_semantics = [#tpu.dimension_semantics<parallel>], iteration_bounds = array<i64: 1>, scalar_prefetch = 0 : i64, scratch_operands = 0 : i64, tpu.core_type = #tpu.core_type<tc>, window_params = [{transform_indices = @transform_0, window_bounds = array<i64: 4, 16>}, {pipeline_mode = #tpu.pipeline_mode<synchronous>, transform_indices = @transform_1, window_bounds = array<i64: 16, 32>}, {pipeline_mode = #tpu.pipeline_mode<synchronous>, transform_indices = @transform_2, window_bounds = array<i64: 32, 32>}, {pipeline_mode = #tpu.pipeline_mode<synchronous>, transform_indices = @transform_3, window_bounds = array<i64: 32, 8>}, {pipeline_mode = #tpu.pipeline_mode<synchronous>, transform_indices = @transform_4, window_bounds = array<i64: 3, 32>}, {transform_indices = @transform_5, window_bounds = array<i64: 4, 8>}]} {
    %c0 = arith.constant 0 : index
    %c0_0 = arith.constant 0 : index
    %0 = vector.load %arg1[%c0, %c0_0] : memref<4x16xf32, #tpu.memory_space<vmem>>, vector<4x16xf32>
    %c0_1 = arith.constant 0 : index
    %c0_2 = arith.constant 0 : index
    %1 = vector.load %arg5[%c0_1, %c0_2] : memref<3x32xf32, #tpu.memory_space<vmem>>, vector<3x32xf32>
    %2 = vector.extract_strided_slice %1 {offsets = [0, 0], sizes = [1, 32], strides = [1, 1]} : vector<3x32xf32> to vector<1x32xf32>
    %3 = vector.extract_strided_slice %1 {offsets = [1, 0], sizes = [1, 32], strides = [1, 1]} : vector<3x32xf32> to vector<1x32xf32>
    %4 = vector.extract_strided_slice %1 {offsets = [2, 0], sizes = [1, 8], strides = [1, 1]} : vector<3x32xf32> to vector<1x8xf32>
    %c0_3 = arith.constant 0 : index
    %c0_4 = arith.constant 0 : index
    %5 = vector.load %arg2[%c0_3, %c0_4] : memref<16x32xf32, #tpu.memory_space<vmem>>, vector<16x32xf32>
    %cst = arith.constant dense<0.000000e+00> : vector<4x32xf32>
    %6 = tpu.matmul %0, %5, %cst {dimension_numbers = #tpu.dot_dimension_numbers<[1], [0], [0], [1], [0, 0, 1, 1], [], []>} : vector<4x16xf32>, vector<16x32xf32>, vector<4x32xf32> -> vector<4x32xf32>
    %7 = vector.broadcast %2 : vector<1x32xf32> to vector<4x32xf32>
    %8 = arith.addf %6, %7 : vector<4x32xf32>
    %9 = math.tanh %8 : vector<4x32xf32>
    %c0_5 = arith.constant 0 : index
    %c0_6 = arith.constant 0 : index
    %10 = vector.load %arg3[%c0_5, %c0_6] : memref<32x32xf32, #tpu.memory_space<vmem>>, vector<32x32xf32>
    %cst_7 = arith.constant dense<0.000000e+00> : vector<4x32xf32>
    %11 = tpu.matmul %9, %10, %cst_7 {dimension_numbers = #tpu.dot_dimension_numbers<[1], [0], [0], [1], [0, 0, 1, 1], [], []>} : vector<4x32xf32>, vector<32x32xf32>, vector<4x32xf32> -> vector<4x32xf32>
    %12 = vector.broadcast %3 : vector<1x32xf32> to vector<4x32xf32>
    %13 = arith.addf %11, %12 : vector<4x32xf32>
    %14 = math.tanh %13 : vector<4x32xf32>
    %c0_8 = arith.constant 0 : index
    %c0_9 = arith.constant 0 : index
    %15 = vector.load %arg4[%c0_8, %c0_9] : memref<32x8xf32, #tpu.memory_space<vmem>>, vector<32x8xf32>
    %cst_10 = arith.constant dense<0.000000e+00> : vector<4x8xf32>
    %16 = tpu.matmul %14, %15, %cst_10 {dimension_numbers = #tpu.dot_dimension_numbers<[1], [0], [0], [1], [0, 0, 1, 1], [], []>} : vector<4x32xf32>, vector<32x8xf32>, vector<4x8xf32> -> vector<4x8xf32>
    %17 = vector.broadcast %4 : vector<1x8xf32> to vector<4x8xf32>
    %18 = arith.addf %16, %17 : vector<4x8xf32>
    %c0_11 = arith.constant 0 : index
    %c0_12 = arith.constant 0 : index
    %19 = vector.load %arg6[%c0_11, %c0_12] : memref<4x8xf32, #tpu.memory_space<vmem>>, vector<4x8xf32>
    tpu.vector_store %arg6[%c0_11, %c0_12], %18 {strides = array<i32>} : memref<4x8xf32, #tpu.memory_space<vmem>>, vector<4x8xf32>,
    return
  }
  func.func @transform_0(%arg0: i32) -> (i32, i32) {
    %c0_i32 = arith.constant 0 : i32
    %c0_i32_0 = arith.constant 0 : i32
    return %arg0, %c0_i32 : i32, i32
  }
  func.func @transform_1(%arg0: i32) -> (i32, i32) {
    %c0_i32 = arith.constant 0 : i32
    %c0_i32_0 = arith.constant 0 : i32
    %c0_i32_1 = arith.constant 0 : i32
    return %c0_i32, %c0_i32_0 : i32, i32
  }
  func.func @transform_2(%arg0: i32) -> (i32, i32) {
    %c0_i32 = arith.constant 0 : i32
    %c0_i32_0 = arith.constant 0 : i32
    %c0_i32_1 = arith.constant 0 : i32
    return %c0_i32, %c0_i32_0 : i32, i32
  }
  func.func @transform_3(%arg0: i32) -> (i32, i32) {
    %c0_i32 = arith.constant 0 : i32
    %c0_i32_0 = arith.constant 0 : i32
    %c0_i32_1 = arith.constant 0 : i32
    return %c0_i32, %c0_i32_0 : i32, i32
  }
  func.func @transform_4(%arg0: i32) -> (i32, i32) {
    %c0_i32 = arith.constant 0 : i32
    %c0_i32_0 = arith.constant 0 : i32
    %c0_i32_1 = arith.constant 0 : i32
    return %c0_i32, %c0_i32_0 : i32, i32
  }
  func.func @transform_5(%arg0: i32) -> (i32, i32) {
    %c0_i32 = arith.constant 0 : i32
    %c0_i32_0 = arith.constant 0 : i32
    return %arg0, %c0_i32 : i32, i32
  }
}

</mosaic_0001>

<llo_original>
// kernel: tpu_custom_call.1
$region0: #{tpu_custom_call.1}
  #allocation0 [shape = 'u32[]', space=smem, size = 0x4, offset = 0x4, fixed_abs, tag = 'smem constant byte address 0x4 - core index']
  #allocation1 [shape = 'u32[144,128]{1,0:T(1,128)}', space=vmem, size = 0x12000, scoped, tag = 'internal scratch']
  %s0 = inlined_call_operand.vmem [shape: f32[4,16], index: 0, kind: input, shape index: {}]
  %s1 = inlined_call_operand.hbm [shape: f32[16,32], index: 1, kind: input, shape index: {}]
  %s2 = inlined_call_operand.vmem [shape: f32[32,32], index: 2, kind: input, shape index: {}]
  %s3 = inlined_call_operand.vmem [shape: f32[32,8], index: 3, kind: input, shape index: {}]
  %s4 = inlined_call_operand.vmem [shape: f32[3,32], index: 4, kind: input, shape index: {}]
  %s5 = inlined_call_operand.hbm [shape: f32[4,8], index: 5, kind: output, shape index: {}]
  %s6 = sld [smem:[#allocation0]]
  $region34: #{tpu_custom_call.1} parent=0
    _
  %s8 = ssub.s32 1, %s6
  %s9 = scalar_select 0, %s8, %s6
  $region1: #{tpu_custom_call.1} parent=0
    #allocation2 [shape = 'u8[8192]{0}', space=vmem, size = 0x2000, scoped, tag = 'input window, operand 1, single buffered']
    #allocation3 [shape = 's32[1]{0}', space=sflag, size = 0x4, scoped, tag = 'scoped memory for tpu_custom_call.1']
    #allocation4 [shape = 's32[1]{0}', space=sflag, size = 0x4, scoped, tag = 'scoped memory for tpu_custom_call.1']
    #allocation5 [shape = 'u8[2048]{0}', space=vmem, size = 0x800, scoped, tag = 'output window, operand 0, single buffered']
    %10 = vsyncpa [#allocation3], 0
    %11 = vsyncpa [#allocation4], 0
    // Predicated region
    $region2: #{tpu_custom_call.1} parent=1 // pred_check
      _
    $region3: #{tpu_custom_call.1} parent=1 // pred_check_branch
      %13 = sbr.rel (0) target = $region5
    $region4: #{tpu_custom_call.1} parent=1 // pred_region
      _
    $region5: #{tpu_custom_call.1} parent=1 // pred_fallthru
      _
    // Predicated region
    $region6: #{tpu_custom_call.1} parent=1 // pred_check
      _
    $region7: #{tpu_custom_call.1} parent=1 // pred_check_branch
      %15 = sbr.rel (0) target = $region9
    $region8: #{tpu_custom_call.1} parent=1 // pred_region
      %s17 = ssub.s32 256, 256
      %18 = vsyncadd [#allocation3], %s17
      %s19 = sshll.u32 [#allocation2], 4
      %s20 = int_to_ptr.vmem [resolvable:$true] %s19
      %25 = dma.hbm_to_vmem [thread:$0]  %s1, 256, %s20, [#allocation3], 128, 128, 8
    $region9: #{tpu_custom_call.1} parent=1 // pred_fallthru
      _
    // Predicated region
    $region10: #{tpu_custom_call.1} parent=1 // pred_check
      _
    $region11: #{tpu_custom_call.1} parent=1 // pred_check_branch
      %27 = sbr.rel (0) target = $region13
    $region12: #{tpu_custom_call.1} parent=1 // pred_region
      _
    $region13: #{tpu_custom_call.1} parent=1 // pred_fallthru
      _
    // Predicated region
    $region14: #{tpu_custom_call.1} parent=1 // pred_check
      _
    $region15: #{tpu_custom_call.1} parent=1 // pred_check_branch
      %29 = sbr.rel (0) target = $region17
    $region16: #{tpu_custom_call.1} parent=1 // pred_region
      _
    $region17: #{tpu_custom_call.1} parent=1 // pred_fallthru
      _
    // Predicated region
    $region18: #{tpu_custom_call.1} parent=1 // pred_check
      _
    $region19: #{tpu_custom_call.1} parent=1 // pred_check_branch
      %31 = sbr.rel (0) target = $region21
    $region20: #{tpu_custom_call.1} parent=1 // pred_region
      _
    $region21: #{tpu_custom_call.1} parent=1 // pred_fallthru
      _
    // Predicated region
    $region22: #{tpu_custom_call.1} parent=1 // pred_check
      _
    $region23: #{tpu_custom_call.1} parent=1 // pred_check_branch
      %33 = sbr.rel (0) target = $region25
    $region24: #{tpu_custom_call.1} parent=1 // pred_region
      %34 = dma.done [#allocation3], 256
    $region25: #{tpu_custom_call.1} parent=1 // pred_fallthru
      _
    %v35 = vld [vmem:[%s0] sm:$0xf]
    %v36 = vld [vmem:[%s4] sm:$0x7]
    %v37 = vld [vmem:[#allocation2] sm:$0xff]
    %v38 = vld [vmem:[#allocation2 + $0x8] sm:$0xff]
    %v39 = vlaneseq
    %v40 = vshrl.u32 %v39, 7
    %v41 = vsub.s32 0, %v40
    %v42 = vrot.slane %v36, %v41
    %vm43 = vcmask 130048
    %v45 = vsel %vm43, %v35, 0
    %47 = vmatprep.subr.mxu0 0.0
    %48 = vmatpush1.msra.mxu0 %v37
    %49 = vmatprep.subr.mxu0 0.0
    %50 = vmatpush1.msra.mxu0 %v38
    %51 = vmatprep.subr.mxu0 0.0
    %52 = vmatpush1.msra.mxu0 0.0
    %53 = vmatprep.subr.mxu0 0.0
    %54 = vmatpush1.msra.mxu0 0.0
    %55 = vmatprep.subr.mxu0 0.0
    %56 = vmatpush1.msra.mxu0 0.0
    %57 = vmatprep.subr.mxu0 0.0
    %58 = vmatpush1.msra.mxu0 0.0
    %59 = vmatprep.subr.mxu0 0.0
    %60 = vmatpush1.msra.mxu0 0.0
    %61 = vmatprep.subr.mxu0 0.0
    %62 = vmatpush1.msra.mxu0 0.0
    %63 = vmatprep.subr.mxu0 0.0
    %64 = vmatpush1.msra.mxu0 0.0
    %65 = vmatprep.subr.mxu0 0.0
    %66 = vmatpush1.msra.mxu0 0.0
    %67 = vmatprep.subr.mxu0 0.0
    %68 = vmatpush1.msra.mxu0 0.0
    %69 = vmatprep.subr.mxu0 0.0
    %70 = vmatpush1.msra.mxu0 0.0
    %71 = vmatprep.subr.mxu0 0.0
    %72 = vmatpush1.msra.mxu0 0.0
    %73 = vmatprep.subr.mxu0 0.0
    %74 = vmatpush1.msra.mxu0 0.0
    %75 = vmatprep.subr.mxu0 0.0
    %76 = vmatpush1.msra.mxu0 0.0
    %77 = vmatprep.subr.mxu0 0.0
    %78 = vmatpush1.msra.mxu0 0.0
    %79 = vmatprep.subr.mxu0 0.0
    %80 = vmatpush1.msra.mxu0 0.0
    %81 = vmatprep.subr.mxu0 0.0
    %82 = vmatpush1.msra.mxu0 0.0
    %83 = vmatprep.subr.mxu0 0.0
    %84 = vmatpush1.msra.mxu0 0.0
    %85 = vmatprep.subr.mxu0 0.0
    %86 = vmatpush1.msra.mxu0 0.0
    %87 = vmatprep.subr.mxu0 0.0
    %88 = vmatpush1.msra.mxu0 0.0
    %89 = vmatprep.subr.mxu0 0.0
    %90 = vmatpush1.msra.mxu0 0.0
    %91 = vmatprep.subr.mxu0 0.0
    %92 = vmatpush1.msra.mxu0 0.0
    %93 = vmatprep.subr.mxu0 0.0
    %94 = vmatpush1.msra.mxu0 0.0
    %95 = vmatprep.subr.mxu0 0.0
    %96 = vmatpush1.msra.mxu0 0.0
    %97 = vmatprep.subr.mxu0 0.0
    %98 = vmatpush1.msra.mxu0 0.0
    %99 = vmatprep.subr.mxu0 0.0
    %100 = vmatpush1.msra.mxu0 0.0
    %101 = vmatprep.subr.mxu0 0.0
    %102 = vmatpush1.msra.mxu0 0.0
    %103 = vmatprep.subr.mxu0 0.0
    %104 = vmatpush1.msra.mxu0 0.0
    %105 = vmatprep.subr.mxu0 0.0
    %106 = vmatpush1.msra.mxu0 0.0
    %107 = vmatprep.subr.mxu0 0.0
    %108 = vmatpush1.msra.mxu0 0.0
    %109 = vmatprep.subr.mxu0 0.0
    %110 = vmatpush1.msra.mxu0 0.0
    %111 = vmatprep.mubr.f32.mxu0 0.0
    %112 = vmatmul.mubr.f32.gmra.mrb[0].mxu0 %v45
    %v113 = vpop.f32.mrb[0].mxu0
    %v114 = vadd.f32 %v42, %v113
    %v115 = vpop.f32.mrb[0].mxu0
    %116 = vdwg.mxu0
    %v117 = vtanh.pop %v114
    %v118 = vld [vmem:[%s2] sm:$0xff]
    %v119 = vld [vmem:[%s2 + $0x8] sm:$0xff]
    %v120 = vld [vmem:[%s2 + $0x10] sm:$0xff]
    %v121 = vld [vmem:[%s2 + $0x18] sm:$0xff]
    %v122 = vlaneseq
    %v123 = vshrl.u32 %v122, 7
    %v124 = vsub.s32 1, %v123
    %v125 = vrot.slane %v36, %v124
    %vm126 = vcmask 261120
    %v128 = vsel %vm126, %v117, 0
    %130 = vmatprep.subr.mxu0 0.0
    %131 = vmatpush1.msra.mxu0 %v118
    %132 = vmatprep.subr.mxu0 0.0
    %133 = vmatpush1.msra.mxu0 %v119
    %134 = vmatprep.subr.mxu0 0.0
    %135 = vmatpush1.msra.mxu0 %v120
    %136 = vmatprep.subr.mxu0 0.0
    %137 = vmatpush1.msra.mxu0 %v121
    %138 = vmatprep.subr.mxu0 0.0
    %139 = vmatpush1.msra.mxu0 0.0
    %140 = vmatprep.subr.mxu0 0.0
    %141 = vmatpush1.msra.mxu0 0.0
    %142 = vmatprep.subr.mxu0 0.0
    %143 = vmatpush1.msra.mxu0 0.0
    %144 = vmatprep.subr.mxu0 0.0
    %145 = vmatpush1.msra.mxu0 0.0
    %146 = vmatprep.subr.mxu0 0.0
    %147 = vmatpush1.msra.mxu0 0.0
    %148 = vmatprep.subr.mxu0 0.0
    %149 = vmatpush1.msra.mxu0 0.0
    %150 = vmatprep.subr.mxu0 0.0
    %151 = vmatpush1.msra.mxu0 0.0
    %152 = vmatprep.subr.mxu0 0.0
    %153 = vmatpush1.msra.mxu0 0.0
    %154 = vmatprep.subr.mxu0 0.0
    %155 = vmatpush1.msra.mxu0 0.0
    %156 = vmatprep.subr.mxu0 0.0
    %157 = vmatpush1.msra.mxu0 0.0
    %158 = vmatprep.subr.mxu0 0.0
    %159 = vmatpush1.msra.mxu0 0.0
    %160 = vmatprep.subr.mxu0 0.0
    %161 = vmatpush1.msra.mxu0 0.0
    %162 = vmatprep.subr.mxu0 0.0
    %163 = vmatpush1.msra.mxu0 0.0
    %164 = vmatprep.subr.mxu0 0.0
    %165 = vmatpush1.msra.mxu0 0.0
    %166 = vmatprep.subr.mxu0 0.0
    %167 = vmatpush1.msra.mxu0 0.0
    %168 = vmatprep.subr.mxu0 0.0
    %169 = vmatpush1.msra.mxu0 0.0
    %170 = vmatprep.subr.mxu0 0.0
    %171 = vmatpush1.msra.mxu0 0.0
    %172 = vmatprep.subr.mxu0 0.0
    %173 = vmatpush1.msra.mxu0 0.0
    %174 = vmatprep.subr.mxu0 0.0
    %175 = vmatpush1.msra.mxu0 0.0
    %176 = vmatprep.subr.mxu0 0.0
    %177 = vmatpush1.msra.mxu0 0.0
    %178 = vmatprep.subr.mxu0 0.0
    %179 = vmatpush1.msra.mxu0 0.0
    %180 = vmatprep.subr.mxu0 0.0
    %181 = vmatpush1.msra.mxu0 0.0
    %182 = vmatprep.subr.mxu0 0.0
    %183 = vmatpush1.msra.mxu0 0.0
    %184 = vmatprep.subr.mxu0 0.0
    %185 = vmatpush1.msra.mxu0 0.0
    %186 = vmatprep.subr.mxu0 0.0
    %187 = vmatpush1.msra.mxu0 0.0
    %188 = vmatprep.subr.mxu0 0.0
    %189 = vmatpush1.msra.mxu0 0.0
    %190 = vmatprep.subr.mxu0 0.0
    %191 = vmatpush1.msra.mxu0 0.0
    %192 = vmatprep.subr.mxu0 0.0
    %193 = vmatpush1.msra.mxu0 0.0
    %194 = vmatprep.mubr.f32.mxu0 0.0
    %195 = vmatmul.mubr.f32.gmra.mrb[0].mxu0 %v128
    %v196 = vpop.f32.mrb[0].mxu0
    %v197 = vadd.f32 %v125, %v196
    %v198 = vpop.f32.mrb[0].mxu0
    %199 = vdwg.mxu0
    %v200 = vtanh.pop %v197
    %v201 = vld [vmem:[%s3] sm:$0xff]
    %v202 = vld [vmem:[%s3 + $0x8] sm:$0xff]
    %v203 = vld [vmem:[%s3 + $0x10] sm:$0xff]
    %v204 = vld [vmem:[%s3 + $0x18] sm:$0xff]
    %v205 = vlaneseq
    %v206 = vshrl.u32 %v205, 7
    %v207 = vsub.s32 2, %v206
    %v208 = vrot.slane %v36, %v207
    %v210 = vsel %vm126, %v200, 0
    %212 = vmatprep.subr.mxu0 0.0
    %213 = vmatpush1.msra.mxu0 %v201
    %214 = vmatprep.subr.mxu0 0.0
    %215 = vmatpush1.msra.mxu0 %v202
    %216 = vmatprep.subr.mxu0 0.0
    %217 = vmatpush1.msra.mxu0 %v203
    %218 = vmatprep.subr.mxu0 0.0
    %219 = vmatpush1.msra.mxu0 %v204
    %220 = vmatprep.subr.mxu0 0.0
    %221 = vmatpush1.msra.mxu0 0.0
    %222 = vmatprep.subr.mxu0 0.0
    %223 = vmatpush1.msra.mxu0 0.0
    %224 = vmatprep.subr.mxu0 0.0
    %225 = vmatpush1.msra.mxu0 0.0
    %226 = vmatprep.subr.mxu0 0.0
    %227 = vmatpush1.msra.mxu0 0.0
    %228 = vmatprep.subr.mxu0 0.0
    %229 = vmatpush1.msra.mxu0 0.0
    %230 = vmatprep.subr.mxu0 0.0
    %231 = vmatpush1.msra.mxu0 0.0
    %232 = vmatprep.subr.mxu0 0.0
    %233 = vmatpush1.msra.mxu0 0.0
    %234 = vmatprep.subr.mxu0 0.0
    %235 = vmatpush1.msra.mxu0 0.0
    %236 = vmatprep.subr.mxu0 0.0
    %237 = vmatpush1.msra.mxu0 0.0
    %238 = vmatprep.subr.mxu0 0.0
    %239 = vmatpush1.msra.mxu0 0.0
    %240 = vmatprep.subr.mxu0 0.0
    %241 = vmatpush1.msra.mxu0 0.0
    %242 = vmatprep.subr.mxu0 0.0
    %243 = vmatpush1.msra.mxu0 0.0
    %244 = vmatprep.subr.mxu0 0.0
    %245 = vmatpush1.msra.mxu0 0.0
    %246 = vmatprep.subr.mxu0 0.0
    %247 = vmatpush1.msra.mxu0 0.0
    %248 = vmatprep.subr.mxu0 0.0
    %249 = vmatpush1.msra.mxu0 0.0
    %250 = vmatprep.subr.mxu0 0.0
    %251 = vmatpush1.msra.mxu0 0.0
    %252 = vmatprep.subr.mxu0 0.0
    %253 = vmatpush1.msra.mxu0 0.0
    %254 = vmatprep.subr.mxu0 0.0
    %255 = vmatpush1.msra.mxu0 0.0
    %256 = vmatprep.subr.mxu0 0.0
    %257 = vmatpush1.msra.mxu0 0.0
    %258 = vmatprep.subr.mxu0 0.0
    %259 = vmatpush1.msra.mxu0 0.0
    %260 = vmatprep.subr.mxu0 0.0
    %261 = vmatpush1.msra.mxu0 0.0
    %262 = vmatprep.subr.mxu0 0.0
    %263 = vmatpush1.msra.mxu0 0.0
    %264 = vmatprep.subr.mxu0 0.0
    %265 = vmatpush1.msra.mxu0 0.0
    %266 = vmatprep.subr.mxu0 0.0
    %267 = vmatpush1.msra.mxu0 0.0
    %268 = vmatprep.subr.mxu0 0.0
    %269 = vmatpush1.msra.mxu0 0.0
    %270 = vmatprep.subr.mxu0 0.0
    %271 = vmatpush1.msra.mxu0 0.0
    %272 = vmatprep.subr.mxu0 0.0
    %273 = vmatpush1.msra.mxu0 0.0
    %274 = vmatprep.subr.mxu0 0.0
    %275 = vmatpush1.msra.mxu0 0.0
    %276 = vmatprep.mubr.f32.mxu0 0.0
    %277 = vmatmul.mubr.f32.gmra.mrb[0].mxu0 %v210
    %v278 = vpop.f32.mrb[0].mxu0
    %v279 = vadd.f32 %v208, %v278
    %v280 = vpop.f32.mrb[0].mxu0
    %281 = vdwg.mxu0
    %vm282 = vcmask 60416
    %283 = vst.msk [vmem:[#allocation5] sm:$0xf] %vm282, %v279
    // Predicated region
    $region26: #{tpu_custom_call.1} parent=1 // pred_check
      _
    $region27: #{tpu_custom_call.1} parent=1 // pred_check_branch
      %285 = sbr.rel (0) target = $region29
    $region28: #{tpu_custom_call.1} parent=1 // pred_region
      %s287 = ssub.s32 64, 64
      %288 = vsyncadd [#allocation4], %s287
      %s290 = sshll.u32 [#allocation5], 4
      %s291 = int_to_ptr.vmem [resolvable:$true] %s290
      %293 = dma.vmem_to_hbm [thread:$0]  %s291, 64, %s5, [#allocation4]
    $region29: #{tpu_custom_call.1} parent=1 // pred_fallthru
      _
    // Predicated region
    $region30: #{tpu_custom_call.1} parent=1 // pred_check
      _
    $region31: #{tpu_custom_call.1} parent=1 // pred_check_branch
      %295 = sbr.rel (0) target = $region33
    $region32: #{tpu_custom_call.1} parent=1 // pred_region
      %296 = dma.done [#allocation4], 64
    $region33: #{tpu_custom_call.1} parent=1 // pred_fallthru
      _
    %297 = vsyncpa [#allocation3], 1
    %298 = vsyncpa [#allocation4], 1

</llo_original>
